<compile_context>
chip_gen: v7x
topology: tpu7x:2x2x1
jax: 0.10.0
libtpu: 0.0.40
codegen_flags: <defaults>
</compile_context>

<pallas_src>
import functools

import jax
import jax.numpy as jnp
from jax.experimental import pallas as pl
from jax.experimental.pallas import tpu as pltpu

EPS = 1e-5  # nn.BatchNorm1d default eps


def _basic_block3x3_kernel(x_ref, w1_ref, w2_ref, g1_ref, b1_ref, g2_ref, b2_ref,
                           mask_l_ref, mask_r_ref, valid_ref, o_ref, *, inv_count):
    x = x_ref[...]                       # (C, Lp) f32, exactly zero on padded lanes
    lp = x.shape[-1]
    mask_l = mask_l_ref[...]             # (1, Lp): 0 where a lane is a sample's first position
    mask_r = mask_r_ref[...]             # (1, Lp): 0 where a lane is a sample's last position
    valid = valid_ref[...]               # (1, Lp): 1 on the N*L valid lanes, 0 on padding

    def conv3(h, w_flat):
        # 1D conv, kernel=3, stride=1, padding=1, no bias — as ONE matmul.
        # h: (C, Lp); w_flat: (C, 3C) with w_flat[o, t*C + c] = w[o, c, t].
        left = pltpu.roll(h, shift=1, axis=1) * mask_l         # h[:, j-1], zero at sample start
        right = pltpu.roll(h, shift=lp - 1, axis=1) * mask_r   # h[:, j+1], zero at sample end
        stacked = jnp.concatenate([left, h, right], axis=0)    # (3C, Lp)
        return jnp.dot(w_flat, stacked, preferred_element_type=jnp.float32)

    def batchnorm(y, g, b):
        # Training-mode BatchNorm1d: per-channel stats over the N*L valid lanes
        # (y is exactly zero on padded lanes), biased variance.
        mean = jnp.sum(y, axis=1, keepdims=True) * inv_count
        centered = (y - mean) * valid
        var = jnp.sum(centered * centered, axis=1, keepdims=True) * inv_count
        scale = jax.lax.rsqrt(var + EPS) * g                   # (C, 1); rsqrt -> EUP slot
        return y * scale + (b - mean * scale)                  # one scale/shift pass per element

    # TODO(synk): on v6e/v7x the matmul operands could be cast to bf16 (f32 accumulate);
    # kept f32 here so results match the f32 reference at tight tolerance.
    h = conv3(x, w1_ref[...])
    h = jnp.maximum(batchnorm(h, g1_ref[...], b1_ref[...]), 0.0) * valid  # ReLU, re-zero padding
    h = conv3(h, w2_ref[...])
    h = batchnorm(h, g2_ref[...], b2_ref[...])
    o_ref[...] = jnp.maximum(h + x, 0.0).astype(o_ref.dtype)   # identity residual + ReLU


def basic_block3x3(x, w1, g1, b1, w2, g2, b2):
    """x: (N, C, L); w*: (C, C, 3) conv weights; g*/b*: C-element BN gamma/beta."""
    N, C, L = x.shape
    nl = N * L
    lp = pl.cdiv(nl, 128) * 128          # lane-dense padded length (multiple of 128)

    # (N, C, L) -> lane-dense (C, N*L), zero-padded to (C, Lp).
    x2d = jnp.transpose(x, (1, 0, 2)).reshape(C, nl).astype(jnp.float32)
    x2d = jnp.pad(x2d, ((0, 0), (0, lp - nl)))

    # Fold the 3 conv taps into one (C, 3C) matrix: w_flat[o, t*C + c] = w[o, c, t].
    w1f = jnp.transpose(w1, (0, 2, 1)).reshape(C, 3 * C).astype(jnp.float32)
    w2f = jnp.transpose(w2, (0, 2, 1)).reshape(C, 3 * C).astype(jnp.float32)

    lane = jnp.arange(lp, dtype=jnp.int32)
    pos = lane % L
    mask_l = (pos != 0).astype(jnp.float32)[None, :]
    mask_r = (pos != L - 1).astype(jnp.float32)[None, :]
    valid = (lane < nl).astype(jnp.float32)[None, :]

    g1c = g1.reshape(C, 1).astype(jnp.float32)
    b1c = b1.reshape(C, 1).astype(jnp.float32)
    g2c = g2.reshape(C, 1).astype(jnp.float32)
    b2c = b2.reshape(C, 1).astype(jnp.float32)

    kernel = functools.partial(_basic_block3x3_kernel, inv_count=1.0 / nl)
    vmem = pl.BlockSpec(memory_space=pltpu.MemorySpace.VMEM)

    # Whole block is VMEM-resident in one invocation (full-batch BN statistics needed).
    # TODO(synk): at realistic C/L, add a "parallel" grid over N*L tiles with a two-pass
    # BN reduction so per-step VMEM fits v7x's 64 MiB and both TensorCores engage.
    out2d = pl.pallas_call(
        kernel,
        out_shape=jax.ShapeDtypeStruct((C, lp), jnp.float32),
        in_specs=[vmem] * 10,
        out_specs=vmem,
    )(x2d, w1f, w2f, g1c, b1c, g2c, b2c, mask_l, mask_r, valid)

    out = out2d[:, :nl].reshape(C, N, L).transpose(1, 0, 2)
    return out.astype(x.dtype)


def _reference(x, w1, g1, b1, w2, g2, b2):
    # Pure-JAX reference of the PyTorch forward (training-mode BN, identity residual).
    def conv(xin, w):
        return jax.lax.conv_general_dilated(
            xin, w, window_strides=(1,), padding=((1, 1),),
            dimension_numbers=('NCH', 'OIH', 'NCH'))

    def bn(y, g, b):
        mean = y.mean(axis=(0, 2), keepdims=True)
        var = ((y - mean) ** 2).mean(axis=(0, 2), keepdims=True)
        return (y - mean) / jnp.sqrt(var + EPS) * g.reshape(1, -1, 1) + b.reshape(1, -1, 1)

    out = jax.nn.relu(bn(conv(x, w1), g1, b1))
    out = bn(conv(out, w2), g2, b2)
    return jax.nn.relu(out + x)


if __name__ == "__main__":
    N, C, L = 2, 4, 16          # inplanes3 = planes = 4 (stride=1, downsample=None)
    key = jax.random.PRNGKey(0)
    k = jax.random.split(key, 7)

    x = jax.random.normal(k[0], (N, C, L), dtype=jnp.float32)
    w1 = 0.1 * jax.random.normal(k[1], (C, C, 3), dtype=jnp.float32)   # conv1 weight
    w2 = 0.1 * jax.random.normal(k[2], (C, C, 3), dtype=jnp.float32)   # conv2 weight
    g1 = 1.0 + 0.1 * jax.random.normal(k[3], (C,), dtype=jnp.float32)  # bn1 gamma
    b1 = 0.1 * jax.random.normal(k[4], (C,), dtype=jnp.float32)        # bn1 beta
    g2 = 1.0 + 0.1 * jax.random.normal(k[5], (C,), dtype=jnp.float32)  # bn2 gamma
    b2 = 0.1 * jax.random.normal(k[6], (C,), dtype=jnp.float32)        # bn2 beta

    out = basic_block3x3(x, w1, g1, b1, w2, g2, b2)
    out = jax.block_until_ready(out)

    ref = _reference(x, w1, g1, b1, w2, g2, b2)
    if not jnp.allclose(out, ref, atol=1e-4, rtol=1e-4):
        raise AssertionError(f"mismatch: max err {jnp.max(jnp.abs(out - ref))}")
    print("KERNEL_OK")
</pallas_src>

<mosaic_0001>
module attributes {stable_mosaic.version = 11 : i64} {
  func.func @_basic_block3x3_kernel(%arg0: memref<4x128xf32, #tpu.memory_space<vmem>>, %arg1: memref<4x12xf32, #tpu.memory_space<vmem>>, %arg2: memref<4x12xf32, #tpu.memory_space<vmem>>, %arg3: memref<4x1xf32, #tpu.memory_space<vmem>>, %arg4: memref<4x1xf32, #tpu.memory_space<vmem>>, %arg5: memref<4x1xf32, #tpu.memory_space<vmem>>, %arg6: memref<4x1xf32, #tpu.memory_space<vmem>>, %arg7: memref<1x128xf32, #tpu.memory_space<vmem>>, %arg8: memref<1x128xf32, #tpu.memory_space<vmem>>, %arg9: memref<1x128xf32, #tpu.memory_space<vmem>>, %arg10: memref<4x128xf32, #tpu.memory_space<vmem>>) attributes {dimension_semantics = [], scalar_prefetch = 0 : i64, scratch_operands = 0 : i64, tpu.core_type = #tpu.core_type<tc>} {
    %c0 = arith.constant 0 : index
    %c0_0 = arith.constant 0 : index
    %0 = vector.load %arg0[%c0, %c0_0] : memref<4x128xf32, #tpu.memory_space<vmem>>, vector<4x128xf32>
    %c0_1 = arith.constant 0 : index
    %c0_2 = arith.constant 0 : index
    %1 = vector.load %arg7[%c0_1, %c0_2] : memref<1x128xf32, #tpu.memory_space<vmem>>, vector<1x128xf32>
    %c0_3 = arith.constant 0 : index
    %c0_4 = arith.constant 0 : index
    %2 = vector.load %arg8[%c0_3, %c0_4] : memref<1x128xf32, #tpu.memory_space<vmem>>, vector<1x128xf32>
    %c0_5 = arith.constant 0 : index
    %c0_6 = arith.constant 0 : index
    %3 = vector.load %arg9[%c0_5, %c0_6] : memref<1x128xf32, #tpu.memory_space<vmem>>, vector<1x128xf32>
    %c0_7 = arith.constant 0 : index
    %c0_8 = arith.constant 0 : index
    %4 = vector.load %arg1[%c0_7, %c0_8] : memref<4x12xf32, #tpu.memory_space<vmem>>, vector<4x12xf32>
    %c1_i32 = arith.constant 1 : i32
    %5 = tpu.dynamic_rotate %0 by %c1_i32 dim 1 : vector<4x128xf32>, i32 -> vector<4x128xf32>
    %6 = vector.broadcast %1 : vector<1x128xf32> to vector<4x128xf32>
    %7 = arith.mulf %5, %6 : vector<4x128xf32>
    %c127_i32 = arith.constant 127 : i32
    %8 = tpu.dynamic_rotate %0 by %c127_i32 dim 1 : vector<4x128xf32>, i32 -> vector<4x128xf32>
    %9 = vector.broadcast %2 : vector<1x128xf32> to vector<4x128xf32>
    %10 = arith.mulf %8, %9 : vector<4x128xf32>
    %11 = tpu.concatenate %7, %0, %10 in 0 : vector<4x128xf32>, vector<4x128xf32>, vector<4x128xf32> -> vector<12x128xf32>
    %cst = arith.constant dense<0.000000e+00> : vector<4x128xf32>
    %12 = tpu.matmul %4, %11, %cst {dimension_numbers = #tpu.dot_dimension_numbers<[1], [0], [0], [1], [0, 0, 1, 1], [], []>} : vector<4x12xf32>, vector<12x128xf32>, vector<4x128xf32> -> vector<4x128xf32>
    %c0_9 = arith.constant 0 : index
    %c0_10 = arith.constant 0 : index
    %13 = vector.load %arg3[%c0_9, %c0_10] : memref<4x1xf32, #tpu.memory_space<vmem>>, vector<4x1xf32>
    %c0_11 = arith.constant 0 : index
    %c0_12 = arith.constant 0 : index
    %14 = vector.load %arg4[%c0_11, %c0_12] : memref<4x1xf32, #tpu.memory_space<vmem>>, vector<4x1xf32>
    %cst_13 = arith.constant dense<0.000000e+00> : vector<4xf32>
    %15 = vector.multi_reduction <add>, %12, %cst_13 [1] : vector<4x128xf32> to vector<4xf32>
    %16 = vector.shape_cast %15 : vector<4xf32> to vector<4x1xf32>
    %cst_14 = arith.constant 3.125000e-02 : f32
    %17 = vector.broadcast %cst_14 : f32 to vector<4x1xf32>
    %18 = arith.mulf %16, %17 : vector<4x1xf32>
    %19 = vector.broadcast %18 : vector<4x1xf32> to vector<4x128xf32>
    %20 = arith.subf %12, %19 : vector<4x128xf32>
    %21 = vector.broadcast %3 : vector<1x128xf32> to vector<4x128xf32>
    %22 = arith.mulf %20, %21 : vector<4x128xf32>
    %23 = arith.mulf %22, %22 : vector<4x128xf32>
    %cst_15 = arith.constant dense<0.000000e+00> : vector<4xf32>
    %24 = vector.multi_reduction <add>, %23, %cst_15 [1] : vector<4x128xf32> to vector<4xf32>
    %25 = vector.shape_cast %24 : vector<4xf32> to vector<4x1xf32>
    %cst_16 = arith.constant 3.125000e-02 : f32
    %26 = vector.broadcast %cst_16 : f32 to vector<4x1xf32>
    %27 = arith.mulf %25, %26 : vector<4x1xf32>
    %cst_17 = arith.constant 9.99999974E-6 : f32
    %28 = vector.broadcast %cst_17 : f32 to vector<4x1xf32>
    %29 = arith.addf %27, %28 : vector<4x1xf32>
    %30 = math.rsqrt %29 : vector<4x1xf32>
    %31 = arith.mulf %30, %13 : vector<4x1xf32>
    %32 = vector.broadcast %31 : vector<4x1xf32> to vector<4x128xf32>
    %33 = arith.mulf %12, %32 : vector<4x128xf32>
    %34 = arith.mulf %18, %31 : vector<4x1xf32>
    %35 = arith.subf %14, %34 : vector<4x1xf32>
    %36 = vector.broadcast %35 : vector<4x1xf32> to vector<4x128xf32>
    %37 = arith.addf %33, %36 : vector<4x128xf32>
    %cst_18 = arith.constant 0.000000e+00 : f32
    %38 = vector.broadcast %cst_18 : f32 to vector<4x128xf32>
    %39 = arith.maximumf %37, %38 : vector<4x128xf32>
    %40 = vector.broadcast %3 : vector<1x128xf32> to vector<4x128xf32>
    %41 = arith.mulf %39, %40 : vector<4x128xf32>
    %c0_19 = arith.constant 0 : index
    %c0_20 = arith.constant 0 : index
    %42 = vector.load %arg2[%c0_19, %c0_20] : memref<4x12xf32, #tpu.memory_space<vmem>>, vector<4x12xf32>
    %c1_i32_21 = arith.constant 1 : i32
    %43 = tpu.dynamic_rotate %41 by %c1_i32_21 dim 1 : vector<4x128xf32>, i32 -> vector<4x128xf32>
    %44 = vector.broadcast %1 : vector<1x128xf32> to vector<4x128xf32>
    %45 = arith.mulf %43, %44 : vector<4x128xf32>
    %c127_i32_22 = arith.constant 127 : i32
    %46 = tpu.dynamic_rotate %41 by %c127_i32_22 dim 1 : vector<4x128xf32>, i32 -> vector<4x128xf32>
    %47 = vector.broadcast %2 : vector<1x128xf32> to vector<4x128xf32>
    %48 = arith.mulf %46, %47 : vector<4x128xf32>
    %49 = tpu.concatenate %45, %41, %48 in 0 : vector<4x128xf32>, vector<4x128xf32>, vector<4x128xf32> -> vector<12x128xf32>
    %cst_23 = arith.constant dense<0.000000e+00> : vector<4x128xf32>
    %50 = tpu.matmul %42, %49, %cst_23 {dimension_numbers = #tpu.dot_dimension_numbers<[1], [0], [0], [1], [0, 0, 1, 1], [], []>} : vector<4x12xf32>, vector<12x128xf32>, vector<4x128xf32> -> vector<4x128xf32>
    %c0_24 = arith.constant 0 : index
    %c0_25 = arith.constant 0 : index
    %51 = vector.load %arg5[%c0_24, %c0_25] : memref<4x1xf32, #tpu.memory_space<vmem>>, vector<4x1xf32>
    %c0_26 = arith.constant 0 : index
    %c0_27 = arith.constant 0 : index
    %52 = vector.load %arg6[%c0_26, %c0_27] : memref<4x1xf32, #tpu.memory_space<vmem>>, vector<4x1xf32>
    %cst_28 = arith.constant dense<0.000000e+00> : vector<4xf32>
    %53 = vector.multi_reduction <add>, %50, %cst_28 [1] : vector<4x128xf32> to vector<4xf32>
    %54 = vector.shape_cast %53 : vector<4xf32> to vector<4x1xf32>
    %cst_29 = arith.constant 3.125000e-02 : f32
    %55 = vector.broadcast %cst_29 : f32 to vector<4x1xf32>
    %56 = arith.mulf %54, %55 : vector<4x1xf32>
    %57 = vector.broadcast %56 : vector<4x1xf32> to vector<4x128xf32>
    %58 = arith.subf %50, %57 : vector<4x128xf32>
    %59 = vector.broadcast %3 : vector<1x128xf32> to vector<4x128xf32>
    %60 = arith.mulf %58, %59 : vector<4x128xf32>
    %61 = arith.mulf %60, %60 : vector<4x128xf32>
    %cst_30 = arith.constant dense<0.000000e+00> : vector<4xf32>
    %62 = vector.multi_reduction <add>, %61, %cst_30 [1] : vector<4x128xf32> to vector<4xf32>
    %63 = vector.shape_cast %62 : vector<4xf32> to vector<4x1xf32>
    %cst_31 = arith.constant 3.125000e-02 : f32
    %64 = vector.broadcast %cst_31 : f32 to vector<4x1xf32>
    %65 = arith.mulf %63, %64 : vector<4x1xf32>
    %cst_32 = arith.constant 9.99999974E-6 : f32
    %66 = vector.broadcast %cst_32 : f32 to vector<4x1xf32>
    %67 = arith.addf %65, %66 : vector<4x1xf32>
    %68 = math.rsqrt %67 : vector<4x1xf32>
    %69 = arith.mulf %68, %51 : vector<4x1xf32>
    %70 = vector.broadcast %69 : vector<4x1xf32> to vector<4x128xf32>
    %71 = arith.mulf %50, %70 : vector<4x128xf32>
    %72 = arith.mulf %56, %69 : vector<4x1xf32>
    %73 = arith.subf %52, %72 : vector<4x1xf32>
    %74 = vector.broadcast %73 : vector<4x1xf32> to vector<4x128xf32>
    %75 = arith.addf %71, %74 : vector<4x128xf32>
    %76 = arith.addf %75, %0 : vector<4x128xf32>
    %cst_33 = arith.constant 0.000000e+00 : f32
    %77 = vector.broadcast %cst_33 : f32 to vector<4x128xf32>
    %78 = arith.maximumf %76, %77 : vector<4x128xf32>
    %c0_34 = arith.constant 0 : index
    %c0_35 = arith.constant 0 : index
    %79 = vector.load %arg10[%c0_34, %c0_35] : memref<4x128xf32, #tpu.memory_space<vmem>>, vector<4x128xf32>
    tpu.vector_store %arg10[%c0_34, %c0_35], %78 {strides = array<i32>} : memref<4x128xf32, #tpu.memory_space<vmem>>, vector<4x128xf32>,
    return
  }
}

</mosaic_0001>

<llo_original>
// kernel: tpu_custom_call.1
$region0: #{tpu_custom_call.1}
  #allocation0 [shape = 'u32[]', space=smem, size = 0x4, offset = 0x4, fixed_abs, tag = 'smem constant byte address 0x4 - core index']
  #allocation1 [shape = 'u32[144,128]{1,0:T(1,128)}', space=vmem, size = 0x12000, scoped, tag = 'internal scratch']
  %s0 = inlined_call_operand.vmem [shape: f32[4,128], index: 0, kind: input, shape index: {}]
  %s1 = inlined_call_operand.vmem [shape: f32[4,12], index: 1, kind: input, shape index: {}]
  %s2 = inlined_call_operand.vmem [shape: f32[4,12], index: 2, kind: input, shape index: {}]
  %s3 = inlined_call_operand.vmem [shape: f32[4,1], index: 3, kind: input, shape index: {}]
  %s4 = inlined_call_operand.vmem [shape: f32[4,1], index: 4, kind: input, shape index: {}]
  %s5 = inlined_call_operand.vmem [shape: f32[4,1], index: 5, kind: input, shape index: {}]
  %s6 = inlined_call_operand.vmem [shape: f32[4,1], index: 6, kind: input, shape index: {}]
  %s7 = inlined_call_operand.vmem [shape: f32[1,128], index: 7, kind: input, shape index: {}]
  %s8 = inlined_call_operand.vmem [shape: f32[1,128], index: 8, kind: input, shape index: {}]
  %s9 = inlined_call_operand.vmem [shape: f32[1,128], index: 9, kind: input, shape index: {}]
  %s10 = inlined_call_operand.hbm [shape: f32[4,128], index: 10, kind: output, shape index: {}]
  %s11 = sld [smem:[#allocation0]]
  $region50: #{tpu_custom_call.1} parent=0
    _
  %s13 = ssub.s32 1, %s11
  %s14 = scalar_select 0, %s13, %s11
  $region1: #{tpu_custom_call.1} parent=0
    #allocation2 [shape = 'u8[2048]{0}', space=vmem, size = 0x800, scoped, tag = 'output window, operand 0, single buffered']
    #allocation3 [shape = 's32[1]{0}', space=sflag, size = 0x4, scoped, tag = 'scoped memory for tpu_custom_call.1']
    %15 = vsyncpa [#allocation3], 0
    // Predicated region
    $region2: #{tpu_custom_call.1} parent=1 // pred_check
      _
    $region3: #{tpu_custom_call.1} parent=1 // pred_check_branch
      %17 = sbr.rel (0) target = $region5
    $region4: #{tpu_custom_call.1} parent=1 // pred_region
      _
    $region5: #{tpu_custom_call.1} parent=1 // pred_fallthru
      _
    // Predicated region
    $region6: #{tpu_custom_call.1} parent=1 // pred_check
      _
    $region7: #{tpu_custom_call.1} parent=1 // pred_check_branch
      %19 = sbr.rel (0) target = $region9
    $region8: #{tpu_custom_call.1} parent=1 // pred_region
      _
    $region9: #{tpu_custom_call.1} parent=1 // pred_fallthru
      _
    // Predicated region
    $region10: #{tpu_custom_call.1} parent=1 // pred_check
      _
    $region11: #{tpu_custom_call.1} parent=1 // pred_check_branch
      %21 = sbr.rel (0) target = $region13
    $region12: #{tpu_custom_call.1} parent=1 // pred_region
      _
    $region13: #{tpu_custom_call.1} parent=1 // pred_fallthru
      _
    // Predicated region
    $region14: #{tpu_custom_call.1} parent=1 // pred_check
      _
    $region15: #{tpu_custom_call.1} parent=1 // pred_check_branch
      %23 = sbr.rel (0) target = $region17
    $region16: #{tpu_custom_call.1} parent=1 // pred_region
      _
    $region17: #{tpu_custom_call.1} parent=1 // pred_fallthru
      _
    // Predicated region
    $region18: #{tpu_custom_call.1} parent=1 // pred_check
      _
    $region19: #{tpu_custom_call.1} parent=1 // pred_check_branch
      %25 = sbr.rel (0) target = $region21
    $region20: #{tpu_custom_call.1} parent=1 // pred_region
      _
    $region21: #{tpu_custom_call.1} parent=1 // pred_fallthru
      _
    // Predicated region
    $region22: #{tpu_custom_call.1} parent=1 // pred_check
      _
    $region23: #{tpu_custom_call.1} parent=1 // pred_check_branch
      %27 = sbr.rel (0) target = $region25
    $region24: #{tpu_custom_call.1} parent=1 // pred_region
      _
    $region25: #{tpu_custom_call.1} parent=1 // pred_fallthru
      _
    // Predicated region
    $region26: #{tpu_custom_call.1} parent=1 // pred_check
      _
    $region27: #{tpu_custom_call.1} parent=1 // pred_check_branch
      %29 = sbr.rel (0) target = $region29
    $region28: #{tpu_custom_call.1} parent=1 // pred_region
      _
    $region29: #{tpu_custom_call.1} parent=1 // pred_fallthru
      _
    // Predicated region
    $region30: #{tpu_custom_call.1} parent=1 // pred_check
      _
    $region31: #{tpu_custom_call.1} parent=1 // pred_check_branch
      %31 = sbr.rel (0) target = $region33
    $region32: #{tpu_custom_call.1} parent=1 // pred_region
      _
    $region33: #{tpu_custom_call.1} parent=1 // pred_fallthru
      _
    // Predicated region
    $region34: #{tpu_custom_call.1} parent=1 // pred_check
      _
    $region35: #{tpu_custom_call.1} parent=1 // pred_check_branch
      %33 = sbr.rel (0) target = $region37
    $region36: #{tpu_custom_call.1} parent=1 // pred_region
      _
    $region37: #{tpu_custom_call.1} parent=1 // pred_fallthru
      _
    // Predicated region
    $region38: #{tpu_custom_call.1} parent=1 // pred_check
      _
    $region39: #{tpu_custom_call.1} parent=1 // pred_check_branch
      %35 = sbr.rel (0) target = $region41
    $region40: #{tpu_custom_call.1} parent=1 // pred_region
      _
    $region41: #{tpu_custom_call.1} parent=1 // pred_fallthru
      _
    %v36 = vld [vmem:[%s0] sm:$0xf]
    %v37 = vld [vmem:[%s7] sm:$0x1]
    %v38 = vld [vmem:[%s8] sm:$0x1]
    %v39 = vld [vmem:[%s9] sm:$0x1]
    %v40 = vld [vmem:[%s1] sm:$0xf]
    %41 = vrot.lane.b32.xlu0 %v36, 1
    %v42 = vpop.permute.xlu0 %41
    %v44 = vlaneseq
    %v45 = vshrl.u32 %v44, 7
    %v46 = vsub.s32 0, %v45
    %v47 = vrot.slane %v37, %v46
    %v49 = vmul.f32 %v42, %v47
    %50 = vrot.lane.b32.xlu0 %v36, 127
    %v51 = vpop.permute.xlu0 %50
    %v53 = vlaneseq
    %v54 = vshrl.u32 %v53, 7
    %v55 = vsub.s32 0, %v54
    %v56 = vrot.slane %v38, %v55
    %v58 = vmul.f32 %v51, %v56
    %v60 = vrot.slane %v36, 4
    %vm62 = vcmask 1043456
    %v63 = vsel %vm62, %v49, %v60
    %vm64 = vcmask 97280
    %v66 = vsel %vm64, %v40, 0
    %v69 = vsel %vm62, %v58, 0
    %71 = vmatprep.subr.mxu0 0.0
    %72 = vmatpush1.msra.mxu0 %v63
    %73 = vmatprep.subr.mxu0 0.0
    %74 = vmatpush1.msra.mxu0 %v69
    %75 = vmatprep.subr.mxu0 0.0
    %76 = vmatpush1.msra.mxu0 0.0
    %77 = vmatprep.subr.mxu0 0.0
    %78 = vmatpush1.msra.mxu0 0.0
    %79 = vmatprep.subr.mxu0 0.0
    %80 = vmatpush1.msra.mxu0 0.0
    %81 = vmatprep.subr.mxu0 0.0
    %82 = vmatpush1.msra.mxu0 0.0
    %83 = vmatprep.subr.mxu0 0.0
    %84 = vmatpush1.msra.mxu0 0.0
    %85 = vmatprep.subr.mxu0 0.0
    %86 = vmatpush1.msra.mxu0 0.0
    %87 = vmatprep.subr.mxu0 0.0
    %88 = vmatpush1.msra.mxu0 0.0
    %89 = vmatprep.subr.mxu0 0.0
    %90 = vmatpush1.msra.mxu0 0.0
    %91 = vmatprep.subr.mxu0 0.0
    %92 = vmatpush1.msra.mxu0 0.0
    %93 = vmatprep.subr.mxu0 0.0
    %94 = vmatpush1.msra.mxu0 0.0
    %95 = vmatprep.subr.mxu0 0.0
    %96 = vmatpush1.msra.mxu0 0.0
    %97 = vmatprep.subr.mxu0 0.0
    %98 = vmatpush1.msra.mxu0 0.0
    %99 = vmatprep.subr.mxu0 0.0
    %100 = vmatpush1.msra.mxu0 0.0
    %101 = vmatprep.subr.mxu0 0.0
    %102 = vmatpush1.msra.mxu0 0.0
    %103 = vmatprep.subr.mxu0 0.0
    %104 = vmatpush1.msra.mxu0 0.0
    %105 = vmatprep.subr.mxu0 0.0
    %106 = vmatpush1.msra.mxu0 0.0
    %107 = vmatprep.subr.mxu0 0.0
    %108 = vmatpush1.msra.mxu0 0.0
    %109 = vmatprep.subr.mxu0 0.0
    %110 = vmatpush1.msra.mxu0 0.0
    %111 = vmatprep.subr.mxu0 0.0
    %112 = vmatpush1.msra.mxu0 0.0
    %113 = vmatprep.subr.mxu0 0.0
    %114 = vmatpush1.msra.mxu0 0.0
    %115 = vmatprep.subr.mxu0 0.0
    %116 = vmatpush1.msra.mxu0 0.0
    %117 = vmatprep.subr.mxu0 0.0
    %118 = vmatpush1.msra.mxu0 0.0
    %119 = vmatprep.subr.mxu0 0.0
    %120 = vmatpush1.msra.mxu0 0.0
    %121 = vmatprep.subr.mxu0 0.0
    %122 = vmatpush1.msra.mxu0 0.0
    %123 = vmatprep.subr.mxu0 0.0
    %124 = vmatpush1.msra.mxu0 0.0
    %125 = vmatprep.subr.mxu0 0.0
    %126 = vmatpush1.msra.mxu0 0.0
    %127 = vmatprep.subr.mxu0 0.0
    %128 = vmatpush1.msra.mxu0 0.0
    %129 = vmatprep.subr.mxu0 0.0
    %130 = vmatpush1.msra.mxu0 0.0
    %131 = vmatprep.subr.mxu0 0.0
    %132 = vmatpush1.msra.mxu0 0.0
    %133 = vmatprep.subr.mxu0 0.0
    %134 = vmatpush1.msra.mxu0 0.0
    %135 = vmatprep.mubr.f32.mxu0 0.0
    %136 = vmatmul.mubr.f32.gmra.mrb[0].mxu0 %v66
    %v137 = vpop.f32.mrb[0].mxu0
    %v138 = vadd.f32 0.0, %v137
    %v139 = vpop.f32.mrb[0].mxu0
    %140 = vdwg.mxu0
    %v141 = vld [vmem:[%s3] sm:$0xf]
    %v142 = vld [vmem:[%s4] sm:$0xf]
    %v143 = vsel %vm62, %v138, 0.0
    %144 = vadd.xlane.f32.xlu0 %v143
    %v145 = vpop.xlane.xlu0 %144
    %v146 = vmul.f32 %v145, 0.03125
    %v147 = vsub.f32 %v138, %v146
    %v149 = vlaneseq
    %v150 = vshrl.u32 %v149, 7
    %v151 = vsub.s32 0, %v150
    %v152 = vrot.slane %v39, %v151
    %v154 = vmul.f32 %v147, %v152
    %v155 = vmul.f32 %v154, %v154
    %v156 = vsel %vm62, %v155, 0.0
    %157 = vadd.xlane.f32.xlu0 %v156
    %v158 = vpop.xlane.xlu0 %157
    %v159 = vmul.f32 %v158, 0.03125
    %v160 = vadd.f32 %v159, 1e-05
    %v161 = vrsqrt.pop %v160
    %v162 = vmul.f32 %v161, %v141
    %164 = vset.pattern.permute.xlu0 0
    %165 = vperm.xlu0 %164, %v162
    %v166 = vpop.permute.xlu0 %165
    %v168 = vmul.f32 %v138, %v166
    %v169 = vmul.f32 %v146, %v162
    %v170 = vsub.f32 %v142, %v169
    %172 = vset.pattern.permute.xlu0 0
    %173 = vperm.xlu0 %172, %v170
    %v174 = vpop.permute.xlu0 %173
    %v176 = vadd.f32 %v168, %v174
    %v177 = vmax.f32 %v176, 0.0
    %v178 = vmul.f32 %v177, %v152
    %v179 = vld [vmem:[%s2] sm:$0xf]
    %180 = vrot.lane.b32.xlu0 %v178, 1
    %v181 = vpop.permute.xlu0 %180
    %v182 = vmul.f32 %v181, %v47
    %183 = vrot.lane.b32.xlu0 %v178, 127
    %v184 = vpop.permute.xlu0 %183
    %v185 = vmul.f32 %v184, %v56
    %v187 = vrot.slane %v178, 4
    %v189 = vsel %vm62, %v182, %v187
    %v191 = vsel %vm64, %v179, 0
    %v194 = vsel %vm62, %v185, 0
    %196 = vmatprep.subr.mxu0 0.0
    %197 = vmatpush1.msra.mxu0 %v189
    %198 = vmatprep.subr.mxu0 0.0
    %199 = vmatpush1.msra.mxu0 %v194
    %200 = vmatprep.subr.mxu0 0.0
    %201 = vmatpush1.msra.mxu0 0.0
    %202 = vmatprep.subr.mxu0 0.0
    %203 = vmatpush1.msra.mxu0 0.0
    %204 = vmatprep.subr.mxu0 0.0
    %205 = vmatpush1.msra.mxu0 0.0
    %206 = vmatprep.subr.mxu0 0.0
    %207 = vmatpush1.msra.mxu0 0.0
    %208 = vmatprep.subr.mxu0 0.0
    %209 = vmatpush1.msra.mxu0 0.0
    %210 = vmatprep.subr.mxu0 0.0
    %211 = vmatpush1.msra.mxu0 0.0
    %212 = vmatprep.subr.mxu0 0.0
    %213 = vmatpush1.msra.mxu0 0.0
    %214 = vmatprep.subr.mxu0 0.0
    %215 = vmatpush1.msra.mxu0 0.0
    %216 = vmatprep.subr.mxu0 0.0
    %217 = vmatpush1.msra.mxu0 0.0
    %218 = vmatprep.subr.mxu0 0.0
    %219 = vmatpush1.msra.mxu0 0.0
    %220 = vmatprep.subr.mxu0 0.0
    %221 = vmatpush1.msra.mxu0 0.0
    %222 = vmatprep.subr.mxu0 0.0
    %223 = vmatpush1.msra.mxu0 0.0
    %224 = vmatprep.subr.mxu0 0.0
    %225 = vmatpush1.msra.mxu0 0.0
    %226 = vmatprep.subr.mxu0 0.0
    %227 = vmatpush1.msra.mxu0 0.0
    %228 = vmatprep.subr.mxu0 0.0
    %229 = vmatpush1.msra.mxu0 0.0
    %230 = vmatprep.subr.mxu0 0.0
    %231 = vmatpush1.msra.mxu0 0.0
    %232 = vmatprep.subr.mxu0 0.0
    %233 = vmatpush1.msra.mxu0 0.0
    %234 = vmatprep.subr.mxu0 0.0
    %235 = vmatpush1.msra.mxu0 0.0
    %236 = vmatprep.subr.mxu0 0.0
    %237 = vmatpush1.msra.mxu0 0.0
    %238 = vmatprep.subr.mxu0 0.0
    %239 = vmatpush1.msra.mxu0 0.0
    %240 = vmatprep.subr.mxu0 0.0
    %241 = vmatpush1.msra.mxu0 0.0
    %242 = vmatprep.subr.mxu0 0.0
    %243 = vmatpush1.msra.mxu0 0.0
    %244 = vmatprep.subr.mxu0 0.0
    %245 = vmatpush1.msra.mxu0 0.0
    %246 = vmatprep.subr.mxu0 0.0
    %247 = vmatpush1.msra.mxu0 0.0
    %248 = vmatprep.subr.mxu0 0.0
    %249 = vmatpush1.msra.mxu0 0.0
    %250 = vmatprep.subr.mxu0 0.0
    %251 = vmatpush1.msra.mxu0 0.0
    %252 = vmatprep.subr.mxu0 0.0
    %253 = vmatpush1.msra.mxu0 0.0
    %254 = vmatprep.subr.mxu0 0.0
    %255 = vmatpush1.msra.mxu0 0.0
    %256 = vmatprep.subr.mxu0 0.0
    %257 = vmatpush1.msra.mxu0 0.0
    %258 = vmatprep.subr.mxu0 0.0
    %259 = vmatpush1.msra.mxu0 0.0
    %260 = vmatprep.mubr.f32.mxu0 0.0
    %261 = vmatmul.mubr.f32.gmra.mrb[0].mxu0 %v191
    %v262 = vpop.f32.mrb[0].mxu0
    %v263 = vadd.f32 0.0, %v262
    %v264 = vpop.f32.mrb[0].mxu0
    %265 = vdwg.mxu0
    %v266 = vld [vmem:[%s5] sm:$0xf]
    %v267 = vld [vmem:[%s6] sm:$0xf]
    %v268 = vsel %vm62, %v263, 0.0
    %269 = vadd.xlane.f32.xlu0 %v268
    %v270 = vpop.xlane.xlu0 %269
    %v271 = vmul.f32 %v270, 0.03125
    %v272 = vsub.f32 %v263, %v271
    %v273 = vmul.f32 %v272, %v152
    %v274 = vmul.f32 %v273, %v273
    %v275 = vsel %vm62, %v274, 0.0
    %276 = vadd.xlane.f32.xlu0 %v275
    %v277 = vpop.xlane.xlu0 %276
    %v278 = vmul.f32 %v277, 0.03125
    %v279 = vadd.f32 %v278, 1e-05
    %v280 = vrsqrt.pop %v279
    %v281 = vmul.f32 %v280, %v266
    %283 = vset.pattern.permute.xlu0 0
    %284 = vperm.xlu0 %283, %v281
    %v285 = vpop.permute.xlu0 %284
    %v287 = vmul.f32 %v263, %v285
    %v288 = vmul.f32 %v271, %v281
    %v289 = vsub.f32 %v267, %v288
    %291 = vset.pattern.permute.xlu0 0
    %292 = vperm.xlu0 %291, %v289
    %v293 = vpop.permute.xlu0 %292
    %v295 = vadd.f32 %v287, %v293
    %v296 = vadd.f32 %v295, %v36
    %v297 = vmax.f32 %v296, 0.0
    %298 = vst [vmem:[#allocation2] sm:$0xf] %v297
    // Predicated region
    $region42: #{tpu_custom_call.1} parent=1 // pred_check
      _
    $region43: #{tpu_custom_call.1} parent=1 // pred_check_branch
      %300 = sbr.rel (0) target = $region45
    $region44: #{tpu_custom_call.1} parent=1 // pred_region
      %s302 = ssub.s32 64, 64
      %303 = vsyncadd [#allocation3], %s302
      %s305 = sshll.u32 [#allocation2], 4
      %s306 = int_to_ptr.vmem [resolvable:$true] %s305
      %308 = dma.vmem_to_hbm [thread:$0]  %s306, 64, %s10, [#allocation3]
    $region45: #{tpu_custom_call.1} parent=1 // pred_fallthru
      _
    // Predicated region
    $region46: #{tpu_custom_call.1} parent=1 // pred_check
      _
    $region47: #{tpu_custom_call.1} parent=1 // pred_check_branch
      %310 = sbr.rel (0) target = $region49
    $region48: #{tpu_custom_call.1} parent=1 // pred_region
      %311 = dma.done [#allocation3], 64
    $region49: #{tpu_custom_call.1} parent=1 // pred_fallthru
      _
    %312 = vsyncpa [#allocation3], 1

</llo_original>
